<compile_context>
chip_gen: v6e
topology: v6e:2x2x1
jax: 0.10.0
libtpu: 0.0.40
codegen_flags: <defaults>
</compile_context>

<pallas_src>
import functools

import jax
import jax.numpy as jnp
import numpy as np
from jax.experimental import pallas as pl
from jax.experimental.pallas import tpu as pltpu

_EPS = 1e-6      # PyTorch PairwiseDistance default eps
_LANES = 128


def _cdiv(a, b):
    return (a + b - 1) // b


def _round_up(a, b):
    return _cdiv(a, b) * b


def _chip_config():
    """(per-input per-buffer tile byte budget, scoped VMEM limit, parallel chunks)."""
    vmem_cap = 128 * 1024 * 1024
    try:
        vmem_cap = int(pltpu.get_tpu_info().vmem_capacity_bytes)
    except Exception:
        pass
    if vmem_cap <= 64 * 1024 * 1024:
        # v7x-class: 64 MiB VMEM per TC, 2 TensorCores per chip.
        # 2 inputs x 2 pipeline buffers x 8 MiB = 32 MiB live < 48 MiB limit.
        return 8 * 1024 * 1024, 48 * 1024 * 1024, 2
    # v5e / v6e: 128 MiB VMEM, single TensorCore.  Large tiles amortize the
    # ~0.35 us per-grid-step fixed cost; no big scratch left to budget for.
    return 16 * 1024 * 1024, 96 * 1024 * 1024, 1


def _tile_sum(x):
    """(rows, k) -> (1, 1): sublane reduce then lane reduce (2-D throughout)."""
    return jnp.sum(jnp.sum(x, axis=0, keepdims=True), axis=1, keepdims=True)


def _l2_loss_kernel(g_ref, t_ref, seg_ref, out_ref, *,
                    k, n_segs, tile_rows, num_blocks, n_inner):
    p = pl.program_id(0)                 # parallel chunk (megacore sharding on v7x)
    i = pl.program_id(1)                 # sequential steps within a chunk
    block = p * n_inner + i              # un-clamped logical block id

    @pl.when(i == 0)
    def _():
        out_ref[...] = jnp.zeros_like(out_ref)

    # In-register upcast; inputs stream HBM->VMEM in their native dtype.
    diff = g_ref[...].astype(jnp.float32) - t_ref[...].astype(jnp.float32) + _EPS
    sq = diff * diff                                            # (tile_rows, lane_w)

    if k > 1:
        # k norm-rows packed per 128-lane row: per-segment sums as one MXU
        # matmul against the static 0/1 (128, k) segment matrix, f32-accurate.
        row_sq = jnp.dot(sq, seg_ref[...],
                         preferred_element_type=jnp.float32,
                         precision=jax.lax.Precision.HIGHEST)   # (tile_rows, k)
    else:
        row_sq = jnp.sum(sq, axis=-1, keepdims=True)            # (tile_rows, 1)

    row_dist = jnp.sqrt(row_sq)                                 # (tile_rows, k)

    # Interior blocks: every row/segment is valid -> plain reduction, no mask.
    @pl.when(block < num_blocks - 1)
    def _():
        out_ref[...] += _tile_sum(row_dist)[None]

    # Tail block only: mask partial-block garbage rows (possibly NaN/Inf; the
    # jnp.where select is safe) and ragged-packing zero segments.
    @pl.when(block == num_blocks - 1)
    def _():
        packed_row = block * tile_rows + jax.lax.broadcasted_iota(
            jnp.int32, row_dist.shape, 0)
        seg_idx = jax.lax.broadcasted_iota(jnp.int32, row_dist.shape, 1)
        valid = packed_row * k + seg_idx < n_segs
        out_ref[...] += _tile_sum(jnp.where(valid, row_dist, 0.0))[None]

    # Grid steps with block >= num_blocks (only possible when num_blocks is not
    # a multiple of n_par) fall through both whens and accumulate nothing.


def l2_loss(generated, image_gt, lambda_l2, *, max_tile_rows=None):
    """Pallas implementation of L2_loss.forward(generated, image_gt)."""
    assert generated.shape == image_gt.shape
    shape = generated.shape
    w = int(shape[-1])
    r = int(np.prod(shape[:-1]))
    total = r * w

    # Lane-dense packing whenever the norm axis divides the 128-lane width.
    if w <= _LANES and _LANES % w == 0:
        k = _LANES // w
        lane_w = _LANES
        pad = (-total) % _LANES            # = (k - r % k) * w, whole segments
        g_flat = jnp.reshape(generated, (total,))
        t_flat = jnp.reshape(image_gt, (total,))
        if pad:
            # Only copy in the pipeline, and only for shapes where r is not a
            # multiple of 128/W.  Padded zero segments are excluded by the
            # tail-block mask.
            g_flat = jnp.pad(g_flat, (0, pad))
            t_flat = jnp.pad(t_flat, (0, pad))
        rows = (total + pad) // _LANES
        g2 = jnp.reshape(g_flat, (rows, _LANES))     # free reshape when pad == 0
        t2 = jnp.reshape(t_flat, (rows, _LANES))
    else:
        # General fallback: one norm row per VMEM row (block last dim == full dim).
        k = 1
        lane_w = w
        rows = r
        g2 = jnp.reshape(generated, (rows, w))
        t2 = jnp.reshape(image_gt, (rows, w))

    itemsize = jnp.dtype(generated.dtype).itemsize
    sublane = max(8, 32 // itemsize)       # 8 for f32, 16 for bf16, 32 for 8-bit

    per_input_budget, vmem_limit, n_tc = _chip_config()
    # Budget against the lane-padded VMEM footprint, not the raw HBM bytes.
    vmem_row_bytes = _round_up(lane_w, _LANES) * itemsize
    tile_rows = max(sublane,
                    (per_input_budget // vmem_row_bytes) // sublane * sublane)
    tile_rows = min(tile_rows, _round_up(rows, sublane))
    if max_tile_rows is not None:          # test hook: force multi-block grids
        tile_rows = min(tile_rows, max(sublane, _round_up(max_tile_rows, sublane)))

    num_blocks = _cdiv(rows, tile_rows)    # last block may be partial (NO padding)
    n_par = n_tc if num_blocks >= n_tc else 1
    n_inner = _cdiv(num_blocks, n_par)
    last_block = num_blocks - 1

    def row_block(p, i):
        # Clamp so a possible extra grid step in the last chunk (num_blocks not
        # a multiple of n_par) re-reads the already-resident last block; the
        # kernel skips its accumulation because its un-clamped id >= num_blocks.
        return (jnp.minimum(p * n_inner + i, last_block), 0)

    # Static 0/1 segment-sum matrix (only read by the kernel when k > 1).
    seg_mat = jnp.asarray(
        (np.arange(lane_w)[:, None] // w) == np.arange(k)[None, :],
        dtype=jnp.float32)

    kernel = functools.partial(_l2_loss_kernel, k=k, n_segs=r,
                               tile_rows=tile_rows, num_blocks=num_blocks,
                               n_inner=n_inner)

    partials = pl.pallas_call(
        kernel,
        out_shape=jax.ShapeDtypeStruct((n_par, 8, _LANES), jnp.float32),
        grid_spec=pltpu.PrefetchScalarGridSpec(
            num_scalar_prefetch=0,
            grid=(n_par, n_inner),
            in_specs=[
                pl.BlockSpec((tile_rows, lane_w), row_block),
                pl.BlockSpec((tile_rows, lane_w), row_block),
                pl.BlockSpec((lane_w, k), lambda p, i: (0, 0)),
            ],
            out_specs=pl.BlockSpec((1, 8, _LANES), lambda p, i: (p, 0, 0)),
        ),
        compiler_params=pltpu.CompilerParams(
            dimension_semantics=("parallel", "arbitrary"),
            vmem_limit_bytes=vmem_limit,
        ),
    )(g2, t2, seg_mat)

    # Every element of a chunk's (8,128) output block holds that chunk's sum.
    return (float(lambda_l2) / float(r)) * jnp.sum(partials[:, 0, 0])


def _reference(generated, image_gt, lambda_l2):
    diff = generated.astype(jnp.float32) - image_gt.astype(jnp.float32) + _EPS
    dist = jnp.sqrt(jnp.sum(diff * diff, axis=-1))
    return lambda_l2 * jnp.mean(dist)


if __name__ == "__main__":
    key = jax.random.PRNGKey(0)
    k1, k2, k3, k4 = jax.random.split(key, 4)
    lambda_l2 = 0.5  # deterministic "parameter" of the module

    # Primary case: NCHW image batch, norm along W=16 (lane-dense packed path,
    # zero wrapper-side copies).
    generated = jax.random.normal(k1, (2, 4, 16, 16), dtype=jnp.float32)
    image_gt = jax.random.normal(k2, (2, 4, 16, 16), dtype=jnp.float32)
    loss = l2_loss(generated, image_gt, lambda_l2)
    jax.block_until_ready(loss)
    np.testing.assert_allclose(
        np.asarray(loss), np.asarray(_reference(generated, image_gt, lambda_l2)),
        rtol=1e-5, atol=1e-5)

    # Multi-block grid on the same data (interior fast path + masked tail block).
    loss2 = l2_loss(generated, image_gt, lambda_l2, max_tile_rows=8)
    jax.block_until_ready(loss2)
    np.testing.assert_allclose(
        np.asarray(loss2), np.asarray(_reference(generated, image_gt, lambda_l2)),
        rtol=1e-5, atol=1e-5)

    # Ragged row count (r % (128/W) != 0): packed path kept, tail segments and
    # partial-block rows handled by the gated validity mask.
    g3 = jax.random.normal(k3, (3, 5, 7, 16), dtype=jnp.float32)
    t3 = jax.random.normal(k4, (3, 5, 7, 16), dtype=jnp.float32)
    loss3 = l2_loss(g3, t3, lambda_l2, max_tile_rows=16)
    jax.block_until_ready(loss3)
    np.testing.assert_allclose(
        np.asarray(loss3), np.asarray(_reference(g3, t3, lambda_l2)),
        rtol=1e-5, atol=1e-5)

    print("KERNEL_OK")
</pallas_src>

<mosaic_0001>
module attributes {stable_mosaic.version = 11 : i64} {
  func.func @_l2_loss_kernel(%arg0: i32, %arg1: i32, %arg2: memref<16x128xf32, #tpu.memory_space<vmem>>, %arg3: memref<16x128xf32, #tpu.memory_space<vmem>>, %arg4: memref<128x8xf32, #tpu.memory_space<vmem>>, %arg5: memref<1x8x128xf32, #tpu.memory_space<vmem>>) attributes {dimension_semantics = [#tpu.dimension_semantics<parallel>, #tpu.dimension_semantics<arbitrary>], iteration_bounds = array<i64: 1, 1>, scalar_prefetch = 0 : i64, scratch_operands = 0 : i64, tpu.core_type = #tpu.core_type<tc>, window_params = [{transform_indices = @transform_0, window_bounds = array<i64: 16, 128>}, {transform_indices = @transform_1, window_bounds = array<i64: 16, 128>}, {pipeline_mode = #tpu.pipeline_mode<synchronous>, transform_indices = @transform_2, window_bounds = array<i64: 128, 8>}, {transform_indices = @transform_3, window_bounds = array<i64: 1, 8, 128>}]} {
    %c1_i32 = arith.constant 1 : i32
    %0 = arith.muli %arg0, %c1_i32 : i32
    %1 = arith.addi %0, %arg1 : i32
    %c0_i32 = arith.constant 0 : i32
    %2 = arith.cmpi eq, %arg1, %c0_i32 : i32
    %3 = arith.extui %2 : i1 to i32
    %c0_i32_0 = arith.constant 0 : i32
    %4 = arith.cmpi ne, %3, %c0_i32_0 : i32
    scf.if %4 {
      %cst_11 = arith.constant 0.000000e+00 : f32
      %20 = vector.broadcast %cst_11 : f32 to vector<1x8x128xf32>
      %c0_12 = arith.constant 0 : index
      %c0_13 = arith.constant 0 : index
      %c0_14 = arith.constant 0 : index
      %21 = vector.load %arg5[%c0_12, %c0_13, %c0_14] : memref<1x8x128xf32, #tpu.memory_space<vmem>>, vector<1x8x128xf32>
      tpu.vector_store %arg5[%c0_12, %c0_13, %c0_14], %20 {strides = array<i32>} : memref<1x8x128xf32, #tpu.memory_space<vmem>>, vector<1x8x128xf32>,
    } else {
    }
    %c0 = arith.constant 0 : index
    %c0_1 = arith.constant 0 : index
    %5 = vector.load %arg2[%c0, %c0_1] : memref<16x128xf32, #tpu.memory_space<vmem>>, vector<16x128xf32>
    %c0_2 = arith.constant 0 : index
    %c0_3 = arith.constant 0 : index
    %6 = vector.load %arg3[%c0_2, %c0_3] : memref<16x128xf32, #tpu.memory_space<vmem>>, vector<16x128xf32>
    %7 = arith.subf %5, %6 : vector<16x128xf32>
    %cst = arith.constant 9.99999997E-7 : f32
    %8 = vector.broadcast %cst : f32 to vector<16x128xf32>
    %9 = arith.addf %7, %8 : vector<16x128xf32>
    %10 = arith.mulf %9, %9 : vector<16x128xf32>
    %c0_4 = arith.constant 0 : index
    %c0_5 = arith.constant 0 : index
    %11 = vector.load %arg4[%c0_4, %c0_5] : memref<128x8xf32, #tpu.memory_space<vmem>>, vector<128x8xf32>
    %cst_6 = arith.constant dense<0.000000e+00> : vector<16x8xf32>
    %12 = tpu.matmul %10, %11, %cst_6 {dimension_numbers = #tpu.dot_dimension_numbers<[1], [0], [0], [1], [0, 0, 1, 1], [], []>, precision = #tpu.contract_precision<fp32>} : vector<16x128xf32>, vector<128x8xf32>, vector<16x8xf32> -> vector<16x8xf32>
    %13 = math.sqrt %12 : vector<16x8xf32>
    %c0_i32_7 = arith.constant 0 : i32
    %14 = arith.cmpi slt, %1, %c0_i32_7 : i32
    %15 = arith.extui %14 : i1 to i32
    %c0_i32_8 = arith.constant 0 : i32
    %16 = arith.cmpi ne, %15, %c0_i32_8 : i32
    scf.if %16 {
      %c0_11 = arith.constant 0 : index
      %c0_12 = arith.constant 0 : index
      %c0_13 = arith.constant 0 : index
      %20 = vector.load %arg5[%c0_11, %c0_12, %c0_13] : memref<1x8x128xf32, #tpu.memory_space<vmem>>, vector<1x8x128xf32>
      %cst_14 = arith.constant dense<0.000000e+00> : vector<8xf32>
      %21 = vector.multi_reduction <add>, %13, %cst_14 [0] : vector<16x8xf32> to vector<8xf32>
      %22 = vector.shape_cast %21 : vector<8xf32> to vector<1x8xf32>
      %cst_15 = arith.constant dense<0.000000e+00> : vector<1xf32>
      %23 = vector.multi_reduction <add>, %22, %cst_15 [1] : vector<1x8xf32> to vector<1xf32>
      %24 = vector.shape_cast %23 : vector<1xf32> to vector<1x1xf32>
      %25 = vector.shape_cast %24 : vector<1x1xf32> to vector<1x1x1xf32>
      %26 = vector.broadcast %25 : vector<1x1x1xf32> to vector<1x8x128xf32>
      %27 = arith.addf %20, %26 : vector<1x8x128xf32>
      %c0_16 = arith.constant 0 : index
      %c0_17 = arith.constant 0 : index
      %c0_18 = arith.constant 0 : index
      %28 = vector.load %arg5[%c0_16, %c0_17, %c0_18] : memref<1x8x128xf32, #tpu.memory_space<vmem>>, vector<1x8x128xf32>
      tpu.vector_store %arg5[%c0_16, %c0_17, %c0_18], %27 {strides = array<i32>} : memref<1x8x128xf32, #tpu.memory_space<vmem>>, vector<1x8x128xf32>,
    } else {
    }
    %c0_i32_9 = arith.constant 0 : i32
    %17 = arith.cmpi eq, %1, %c0_i32_9 : i32
    %18 = arith.extui %17 : i1 to i32
    %c0_i32_10 = arith.constant 0 : i32
    %19 = arith.cmpi ne, %18, %c0_i32_10 : i32
    scf.if %19 {
      %c16_i32 = arith.constant 16 : i32
      %20 = arith.muli %1, %c16_i32 : i32
      %21 = tpu.iota {dimensions = array<i32: 0>} : vector<16x8xi32>
      %22 = vector.broadcast %20 : i32 to vector<16x8xi32>
      %23 = arith.addi %22, %21 : vector<16x8xi32>
      %24 = tpu.iota {dimensions = array<i32: 1>} : vector<16x8xi32>
      %c8_i32 = arith.constant 8 : i32
      %25 = vector.broadcast %c8_i32 : i32 to vector<16x8xi32>
      %26 = arith.muli %23, %25 : vector<16x8xi32>
      %27 = arith.addi %26, %24 : vector<16x8xi32>
      %c128_i32 = arith.constant 128 : i32
      %28 = vector.broadcast %c128_i32 : i32 to vector<16x8xi32>
      %29 = arith.cmpi slt, %27, %28 : vector<16x8xi32>
      %c0_11 = arith.constant 0 : index
      %c0_12 = arith.constant 0 : index
      %c0_13 = arith.constant 0 : index
      %30 = vector.load %arg5[%c0_11, %c0_12, %c0_13] : memref<1x8x128xf32, #tpu.memory_space<vmem>>, vector<1x8x128xf32>
      %cst_14 = arith.constant 0.000000e+00 : f32
      %31 = vector.broadcast %cst_14 : f32 to vector<16x8xf32>
      %32 = arith.select %29, %13, %31 : vector<16x8xi1>, vector<16x8xf32>
      %cst_15 = arith.constant dense<0.000000e+00> : vector<8xf32>
      %33 = vector.multi_reduction <add>, %32, %cst_15 [0] : vector<16x8xf32> to vector<8xf32>
      %34 = vector.shape_cast %33 : vector<8xf32> to vector<1x8xf32>
      %cst_16 = arith.constant dense<0.000000e+00> : vector<1xf32>
      %35 = vector.multi_reduction <add>, %34, %cst_16 [1] : vector<1x8xf32> to vector<1xf32>
      %36 = vector.shape_cast %35 : vector<1xf32> to vector<1x1xf32>
      %37 = vector.shape_cast %36 : vector<1x1xf32> to vector<1x1x1xf32>
      %38 = vector.broadcast %37 : vector<1x1x1xf32> to vector<1x8x128xf32>
      %39 = arith.addf %30, %38 : vector<1x8x128xf32>
      %c0_17 = arith.constant 0 : index
      %c0_18 = arith.constant 0 : index
      %c0_19 = arith.constant 0 : index
      %40 = vector.load %arg5[%c0_17, %c0_18, %c0_19] : memref<1x8x128xf32, #tpu.memory_space<vmem>>, vector<1x8x128xf32>
      tpu.vector_store %arg5[%c0_17, %c0_18, %c0_19], %39 {strides = array<i32>} : memref<1x8x128xf32, #tpu.memory_space<vmem>>, vector<1x8x128xf32>,
    } else {
    }
    return
  }
  func.func @transform_0(%arg0: i32, %arg1: i32) -> (i32, i32) {
    %c1_i32 = arith.constant 1 : i32
    %0 = arith.muli %arg0, %c1_i32 : i32
    %1 = arith.addi %0, %arg1 : i32
    %c0_i32 = arith.constant 0 : i32
    %2 = arith.minsi %1, %c0_i32 : i32
    %c0_i32_0 = arith.constant 0 : i32
    %c0_i32_1 = arith.constant 0 : i32
    return %2, %c0_i32_0 : i32, i32
  }
  func.func @transform_1(%arg0: i32, %arg1: i32) -> (i32, i32) {
    %c1_i32 = arith.constant 1 : i32
    %0 = arith.muli %arg0, %c1_i32 : i32
    %1 = arith.addi %0, %arg1 : i32
    %c0_i32 = arith.constant 0 : i32
    %2 = arith.minsi %1, %c0_i32 : i32
    %c0_i32_0 = arith.constant 0 : i32
    %c0_i32_1 = arith.constant 0 : i32
    return %2, %c0_i32_0 : i32, i32
  }
  func.func @transform_2(%arg0: i32, %arg1: i32) -> (i32, i32) {
    %c0_i32 = arith.constant 0 : i32
    %c0_i32_0 = arith.constant 0 : i32
    %c0_i32_1 = arith.constant 0 : i32
    return %c0_i32, %c0_i32_0 : i32, i32
  }
  func.func @transform_3(%arg0: i32, %arg1: i32) -> (i32, i32, i32) {
    %c0_i32 = arith.constant 0 : i32
    %c0_i32_0 = arith.constant 0 : i32
    %c0_i32_1 = arith.constant 0 : i32
    return %arg0, %c0_i32, %c0_i32_0 : i32, i32, i32
  }
}

</mosaic_0001>

<llo_original>
// kernel: tpu_custom_call.1
$region0: #{tpu_custom_call.1}
  #allocation0 [shape = 'u32[]', space=smem, size = 0x4, offset = 0x4, fixed_abs, tag = 'smem constant byte address 0x4 - core index']
  #allocation1 [shape = 'u32[144,128]{1,0:T(1,128)}', space=vmem, size = 0x12000, scoped, tag = 'internal scratch']
  %s0 = inlined_call_operand.vmem [shape: f32[16,128], index: 0, kind: input, shape index: {}]
  %s1 = inlined_call_operand.vmem [shape: f32[16,128], index: 1, kind: input, shape index: {}]
  %s2 = inlined_call_operand.vmem [shape: f32[128,8], index: 2, kind: input, shape index: {}]
  %s3 = inlined_call_operand.hbm [shape: f32[1,8,128], index: 3, kind: output, shape index: {}]
  %s4 = sld [smem:[#allocation0]]
  $region34: #{tpu_custom_call.1} parent=0
    _
  %s6 = ssub.s32 1, %s4
  %s7 = scalar_select 0, %s6, %s4
  $region1: #{tpu_custom_call.1} parent=0
    #allocation2 [shape = 'u8[4096]{0}', space=vmem, size = 0x1000, scoped, tag = 'output window, operand 0, single buffered']
    #allocation3 [shape = 's32[1]{0}', space=sflag, size = 0x4, scoped, tag = 'scoped memory for tpu_custom_call.1']
    %8 = vsyncpa [#allocation3], 0
    // Predicated region
    $region2: #{tpu_custom_call.1} parent=1 // pred_check
      _
    $region3: #{tpu_custom_call.1} parent=1 // pred_check_branch
      %10 = sbr.rel (0) target = $region5
    $region4: #{tpu_custom_call.1} parent=1 // pred_region
      %s11 = sadd.s32 0, 0
      %p12 = scmp.lt.s32.totalorder %s11, 0
      %s13 = scalar_select %p12, %s11, 0
      %s14 = smul.u32 2, %s13
      %p15 = scmp.lt.s32.totalorder %s14, 1
      %s16 = scalar_select %p15, %s14, 1
      %s17 = smul.addr %s16, 8
      %s18 = scalar_lea.vmem %s0, %s17
      %s19 = sadd.s32 0, 0
      %p20 = scmp.lt.s32.totalorder %s19, 0
      %s21 = scalar_select %p20, %s19, 0
      %s22 = smul.u32 2, %s21
    $region5: #{tpu_custom_call.1} parent=1 // pred_fallthru
      _
    // Predicated region
    $region6: #{tpu_custom_call.1} parent=1 // pred_check
      _
    $region7: #{tpu_custom_call.1} parent=1 // pred_check_branch
      %24 = sbr.rel (0) target = $region9
    $region8: #{tpu_custom_call.1} parent=1 // pred_region
      %s25 = sadd.s32 0, 0
      %p26 = scmp.lt.s32.totalorder %s25, 0
      %s27 = scalar_select %p26, %s25, 0
      %s28 = smul.u32 2, %s27
      %p29 = scmp.lt.s32.totalorder %s28, 1
      %s30 = scalar_select %p29, %s28, 1
      %s31 = smul.addr %s30, 8
      %s32 = scalar_lea.vmem %s1, %s31
      %s33 = sadd.s32 0, 0
      %p34 = scmp.lt.s32.totalorder %s33, 0
      %s35 = scalar_select %p34, %s33, 0
      %s36 = smul.u32 2, %s35
    $region9: #{tpu_custom_call.1} parent=1 // pred_fallthru
      _
    // Predicated region
    $region10: #{tpu_custom_call.1} parent=1 // pred_check
      _
    $region11: #{tpu_custom_call.1} parent=1 // pred_check_branch
      %38 = sbr.rel (0) target = $region13
    $region12: #{tpu_custom_call.1} parent=1 // pred_region
      _
    $region13: #{tpu_custom_call.1} parent=1 // pred_fallthru
      _
    %s39 = sadd.s32 0, 0
    %p40 = scmp.lt.s32.totalorder %s39, 0
    %s41 = scalar_select %p40, %s39, 0
    %s42 = smul.u32 2, %s41
    %p43 = scmp.lt.s32.totalorder %s42, 1
    %s44 = scalar_select %p43, %s42, 1
    %s45 = smul.addr %s44, 8
    %s46 = scalar_lea.vmem %s0, %s45
    %s47 = sadd.s32 0, 0
    %p48 = scmp.lt.s32.totalorder %s47, 0
    %s49 = scalar_select %p48, %s47, 0
    %s50 = smul.u32 2, %s49
    %p51 = scmp.lt.s32.totalorder %s50, 1
    %s52 = scalar_select %p51, %s50, 1
    %s53 = smul.addr %s52, 8
    %s54 = scalar_lea.vmem %s1, %s53
    %s55 = sadd.s32 0, 0
    %p56 = scmp.lt.s32.totalorder %s55, 0
    %s57 = scalar_select %p56, %s55, 0
    %s58 = smul.u32 2, %s57
    %p59 = scmp.lt.s32.totalorder %s58, 1
    %s60 = scalar_select %p59, %s58, 1
    %s61 = smul.addr %s60, 8
    %s62 = scalar_lea.vmem %s0, %s61
    %s63 = sadd.s32 0, 0
    %p64 = scmp.lt.s32.totalorder %s63, 0
    %s65 = scalar_select %p64, %s63, 0
    %s66 = smul.u32 2, %s65
    %s67 = sadd.s32 0, 0
    %p68 = scmp.lt.s32.totalorder %s67, 0
    %s69 = scalar_select %p68, %s67, 0
    %s70 = smul.u32 2, %s69
    %p71 = scmp.lt.s32.totalorder %s70, 1
    %s72 = scalar_select %p71, %s70, 1
    %s73 = smul.addr %s72, 8
    %s74 = scalar_lea.vmem %s1, %s73
    %s75 = sadd.s32 0, 0
    %p76 = scmp.lt.s32.totalorder %s75, 0
    %s77 = scalar_select %p76, %s75, 0
    %s78 = smul.u32 2, %s77
    %s79 = sadd.s32 0, 0
    %p80 = scmp.eq.s32.totalorder 0, 0
    // Predicated region
    $region14: #{tpu_custom_call.1} parent=1 // pred_check
      %p81 = pneg %p80
    $region15: #{tpu_custom_call.1} parent=1 // pred_check_branch
      %83 = sbr.rel (%p81) target = $region17
    $region16: #{tpu_custom_call.1} parent=1 // pred_region
      %84 = vst [vmem:[#allocation2] sm:$0xff] 0.0
    $region17: #{tpu_custom_call.1} parent=1 // pred_fallthru
      _
    %v85 = vld [vmem:[%s62] sm:$0xff]
    %v86 = vld [vmem:[%s62 + $0x8] sm:$0xff]
    %v87 = vld [vmem:[%s74] sm:$0xff]
    %v88 = vld [vmem:[%s74 + $0x8] sm:$0xff]
    %v89 = vsub.f32 %v85, %v87
    %v90 = vsub.f32 %v86, %v88
    %v91 = vadd.f32 %v89, 1e-06
    %v92 = vadd.f32 %v90, 1e-06
    %v93 = vmul.f32 %v91, %v91
    %v94 = vmul.f32 %v92, %v92
    %v95 = vld [vmem:[%s2] sm:$0xff]
    %v96 = vld [vmem:[%s2 + $0x8] sm:$0xff]
    %v97 = vld [vmem:[%s2 + $0x10] sm:$0xff]
    %v98 = vld [vmem:[%s2 + $0x18] sm:$0xff]
    %v99 = vld [vmem:[%s2 + $0x20] sm:$0xff]
    %v100 = vld [vmem:[%s2 + $0x28] sm:$0xff]
    %v101 = vld [vmem:[%s2 + $0x30] sm:$0xff]
    %v102 = vld [vmem:[%s2 + $0x38] sm:$0xff]
    %v103 = vld [vmem:[%s2 + $0x40] sm:$0xff]
    %v104 = vld [vmem:[%s2 + $0x48] sm:$0xff]
    %v105 = vld [vmem:[%s2 + $0x50] sm:$0xff]
    %v106 = vld [vmem:[%s2 + $0x58] sm:$0xff]
    %v107 = vld [vmem:[%s2 + $0x60] sm:$0xff]
    %v108 = vld [vmem:[%s2 + $0x68] sm:$0xff]
    %v109 = vld [vmem:[%s2 + $0x70] sm:$0xff]
    %v110 = vld [vmem:[%s2 + $0x78] sm:$0xff]
    %111 = vmatprep.subr.mxu0 0.0
    %v112 = vand.u32 %v110, 4294901760
    %113 = vmatpush1.msra.mxu0 %v112
    %114 = vmatprep.subr.mxu0 0.0
    %v115 = vand.u32 %v109, 4294901760
    %116 = vmatpush1.msra.mxu0 %v115
    %117 = vmatprep.subr.mxu0 0.0
    %v118 = vand.u32 %v108, 4294901760
    %119 = vmatpush1.msra.mxu0 %v118
    %120 = vmatprep.subr.mxu0 0.0
    %v121 = vand.u32 %v107, 4294901760
    %122 = vmatpush1.msra.mxu0 %v121
    %123 = vmatprep.subr.mxu0 0.0
    %v124 = vand.u32 %v106, 4294901760
    %125 = vmatpush1.msra.mxu0 %v124
    %126 = vmatprep.subr.mxu0 0.0
    %v127 = vand.u32 %v105, 4294901760
    %128 = vmatpush1.msra.mxu0 %v127
    %129 = vmatprep.subr.mxu0 0.0
    %v130 = vand.u32 %v104, 4294901760
    %131 = vmatpush1.msra.mxu0 %v130
    %132 = vmatprep.subr.mxu0 0.0
    %v133 = vand.u32 %v103, 4294901760
    %134 = vmatpush1.msra.mxu0 %v133
    %135 = vmatprep.subr.mxu0 0.0
    %v136 = vand.u32 %v102, 4294901760
    %137 = vmatpush1.msra.mxu0 %v136
    %138 = vmatprep.subr.mxu0 0.0
    %v139 = vand.u32 %v101, 4294901760
    %140 = vmatpush1.msra.mxu0 %v139
    %141 = vmatprep.subr.mxu0 0.0
    %v142 = vand.u32 %v100, 4294901760
    %143 = vmatpush1.msra.mxu0 %v142
    %144 = vmatprep.subr.mxu0 0.0
    %v145 = vand.u32 %v99, 4294901760
    %146 = vmatpush1.msra.mxu0 %v145
    %147 = vmatprep.subr.mxu0 0.0
    %v148 = vand.u32 %v98, 4294901760
    %149 = vmatpush1.msra.mxu0 %v148
    %150 = vmatprep.subr.mxu0 0.0
    %v151 = vand.u32 %v97, 4294901760
    %152 = vmatpush1.msra.mxu0 %v151
    %153 = vmatprep.subr.mxu0 0.0
    %v154 = vand.u32 %v96, 4294901760
    %155 = vmatpush1.msra.mxu0 %v154
    %156 = vmatprep.subr.mxu0 0.0
    %v157 = vand.u32 %v95, 4294901760
    %158 = vmatpush1.msra.mxu0 %v157
    %159 = vmatprep.subr.mxu0 0.0
    %160 = vmatpush2.msra.mxu0 0.0
    %161 = vmatprep.subr.mxu0 0.0
    %162 = vmatpush2.msra.mxu0 0.0
    %163 = vmatprep.subr.mxu0 0.0
    %164 = vmatpush2.msra.mxu0 0.0
    %165 = vmatprep.subr.mxu0 0.0
    %166 = vmatpush2.msra.mxu0 0.0
    %167 = vmatprep.subr.mxu0 0.0
    %168 = vmatpush2.msra.mxu0 0.0
    %169 = vmatprep.subr.mxu0 0.0
    %170 = vmatpush2.msra.mxu0 0.0
    %171 = vmatprep.subr.mxu0 0.0
    %172 = vmatpush2.msra.mxu0 0.0
    %173 = vmatprep.subr.mxu0 0.0
    %174 = vmatpush2.msra.mxu0 0.0
    %175 = vmatprep.subr.mxu0 0.0
    %176 = vmatpush2.msra.mxu0 0.0
    %177 = vmatprep.subr.mxu0 0.0
    %178 = vmatpush2.msra.mxu0 0.0
    %179 = vmatprep.subr.mxu0 0.0
    %180 = vmatpush2.msra.mxu0 0.0
    %181 = vmatprep.subr.mxu0 0.0
    %182 = vmatpush2.msra.mxu0 0.0
    %183 = vmatprep.subr.mxu0 0.0
    %184 = vmatpush2.msra.mxu0 0.0
    %185 = vmatprep.subr.mxu0 0.0
    %186 = vmatpush2.msra.mxu0 0.0
    %187 = vmatprep.subr.mxu0 0.0
    %188 = vmatpush2.msra.mxu0 0.0
    %189 = vmatprep.subr.mxu0 0.0
    %190 = vmatpush2.msra.mxu0 0.0
    %191 = vmatprep.mubr.f32.mxu0 0.0
    %v192 = vand.u32 %v93, 4294901760
    %v193 = vsub.f32 %v93, %v192
    %v194 = vand.u32 %v193, 4294901760
    %v195 = vsub.f32 %v193, %v194
    %v196 = vand.u32 %v195, 4294901760
    %197 = vmatmul.mubr.f32.gmra.mxu0 %v196
    %v198 = vpop.f32.mrf.mxu0
    %v199 = vadd.f32 0.0, %v198
    %v200 = vpop.f32.mrf.mxu0
    %201 = vmatprep.mubr.f32.mxu0 0.0
    %v202 = vand.u32 %v94, 4294901760
    %v203 = vsub.f32 %v94, %v202
    %v204 = vand.u32 %v203, 4294901760
    %v205 = vsub.f32 %v203, %v204
    %v206 = vand.u32 %v205, 4294901760
    %207 = vmatmul.mubr.f32.gmra.mxu0 %v206
    %v208 = vpop.f32.mrf.mxu0
    %v209 = vadd.f32 0.0, %v208
    %v210 = vpop.f32.mrf.mxu0
    %211 = vdwg.mxu0
    %212 = vmatprep.subr.mxu0 0.0
    %v213 = vand.u32 %v110, 4294901760
    %v214 = vsub.f32 %v110, %v213
    %v215 = vand.u32 %v214, 4294901760
    %v216 = vsub.f32 %v214, %v215
    %v217 = vand.u32 %v216, 4294901760
    %218 = vmatpush1.msra.mxu0 %v217
    %219 = vmatprep.subr.mxu0 0.0
    %v220 = vand.u32 %v109, 4294901760
    %v221 = vsub.f32 %v109, %v220
    %v222 = vand.u32 %v221, 4294901760
    %v223 = vsub.f32 %v221, %v222
    %v224 = vand.u32 %v223, 4294901760
    %225 = vmatpush1.msra.mxu0 %v224
    %226 = vmatprep.subr.mxu0 0.0
    %v227 = vand.u32 %v108, 4294901760
    %v228 = vsub.f32 %v108, %v227
    %v229 = vand.u32 %v228, 4294901760
    %v230 = vsub.f32 %v228, %v229
    %v231 = vand.u32 %v230, 4294901760
    %232 = vmatpush1.msra.mxu0 %v231
    %233 = vmatprep.subr.mxu0 0.0
    %v234 = vand.u32 %v107, 4294901760
    %v235 = vsub.f32 %v107, %v234
    %v236 = vand.u32 %v235, 4294901760
    %v237 = vsub.f32 %v235, %v236
    %v238 = vand.u32 %v237, 4294901760
    %239 = vmatpush1.msra.mxu0 %v238
    %240 = vmatprep.subr.mxu0 0.0
    %v241 = vand.u32 %v106, 4294901760
    %v242 = vsub.f32 %v106, %v241
    %v243 = vand.u32 %v242, 4294901760
    %v244 = vsub.f32 %v242, %v243
    %v245 = vand.u32 %v244, 4294901760
    %246 = vmatpush1.msra.mxu0 %v245
    %247 = vmatprep.subr.mxu0 0.0
    %v248 = vand.u32 %v105, 4294901760
    %v249 = vsub.f32 %v105, %v248
    %v250 = vand.u32 %v249, 4294901760
    %v251 = vsub.f32 %v249, %v250
    %v252 = vand.u32 %v251, 4294901760
    %253 = vmatpush1.msra.mxu0 %v252
    %254 = vmatprep.subr.mxu0 0.0
    %v255 = vand.u32 %v104, 4294901760
    %v256 = vsub.f32 %v104, %v255
    %v257 = vand.u32 %v256, 4294901760
    %v258 = vsub.f32 %v256, %v257
    %v259 = vand.u32 %v258, 4294901760
    %260 = vmatpush1.msra.mxu0 %v259
    %261 = vmatprep.subr.mxu0 0.0
    %v262 = vand.u32 %v103, 4294901760
    %v263 = vsub.f32 %v103, %v262
    %v264 = vand.u32 %v263, 4294901760
    %v265 = vsub.f32 %v263, %v264
    %v266 = vand.u32 %v265, 4294901760
    %267 = vmatpush1.msra.mxu0 %v266
    %268 = vmatprep.subr.mxu0 0.0
    %v269 = vand.u32 %v102, 4294901760
    %v270 = vsub.f32 %v102, %v269
    %v271 = vand.u32 %v270, 4294901760
    %v272 = vsub.f32 %v270, %v271
    %v273 = vand.u32 %v272, 4294901760
    %274 = vmatpush1.msra.mxu0 %v273
    %275 = vmatprep.subr.mxu0 0.0
    %v276 = vand.u32 %v101, 4294901760
    %v277 = vsub.f32 %v101, %v276
    %v278 = vand.u32 %v277, 4294901760
    %v279 = vsub.f32 %v277, %v278
    %v280 = vand.u32 %v279, 4294901760
    %281 = vmatpush1.msra.mxu0 %v280
    %282 = vmatprep.subr.mxu0 0.0
    %v283 = vand.u32 %v100, 4294901760
    %v284 = vsub.f32 %v100, %v283
    %v285 = vand.u32 %v284, 4294901760
    %v286 = vsub.f32 %v284, %v285
    %v287 = vand.u32 %v286, 4294901760
    %288 = vmatpush1.msra.mxu0 %v287
    %289 = vmatprep.subr.mxu0 0.0
    %v290 = vand.u32 %v99, 4294901760
    %v291 = vsub.f32 %v99, %v290
    %v292 = vand.u32 %v291, 4294901760
    %v293 = vsub.f32 %v291, %v292
    %v294 = vand.u32 %v293, 4294901760
    %295 = vmatpush1.msra.mxu0 %v294
    %296 = vmatprep.subr.mxu0 0.0
    %v297 = vand.u32 %v98, 4294901760
    %v298 = vsub.f32 %v98, %v297
    %v299 = vand.u32 %v298, 4294901760
    %v300 = vsub.f32 %v298, %v299
    %v301 = vand.u32 %v300, 4294901760
    %302 = vmatpush1.msra.mxu0 %v301
    %303 = vmatprep.subr.mxu0 0.0
    %v304 = vand.u32 %v97, 4294901760
    %v305 = vsub.f32 %v97, %v304
    %v306 = vand.u32 %v305, 4294901760
    %v307 = vsub.f32 %v305, %v306
    %v308 = vand.u32 %v307, 4294901760
    %309 = vmatpush1.msra.mxu0 %v308
    %310 = vmatprep.subr.mxu0 0.0
    %v311 = vand.u32 %v96, 4294901760
    %v312 = vsub.f32 %v96, %v311
    %v313 = vand.u32 %v312, 4294901760
    %v314 = vsub.f32 %v312, %v313
    %v315 = vand.u32 %v314, 4294901760
    %316 = vmatpush1.msra.mxu0 %v315
    %317 = vmatprep.subr.mxu0 0.0
    %v318 = vand.u32 %v95, 4294901760
    %v319 = vsub.f32 %v95, %v318
    %v320 = vand.u32 %v319, 4294901760
    %v321 = vsub.f32 %v319, %v320
    %v322 = vand.u32 %v321, 4294901760
    %323 = vmatpush1.msra.mxu0 %v322
    %324 = vmatprep.subr.mxu0 0.0
    %325 = vmatpush2.msra.mxu0 0.0
    %326 = vmatprep.subr.mxu0 0.0
    %327 = vmatpush2.msra.mxu0 0.0
    %328 = vmatprep.subr.mxu0 0.0
    %329 = vmatpush2.msra.mxu0 0.0
    %330 = vmatprep.subr.mxu0 0.0
    %331 = vmatpush2.msra.mxu0 0.0
    %332 = vmatprep.subr.mxu0 0.0
    %333 = vmatpush2.msra.mxu0 0.0
    %334 = vmatprep.subr.mxu0 0.0
    %335 = vmatpush2.msra.mxu0 0.0
    %336 = vmatprep.subr.mxu0 0.0
    %337 = vmatpush2.msra.mxu0 0.0
    %338 = vmatprep.subr.mxu0 0.0
    %339 = vmatpush2.msra.mxu0 0.0
    %340 = vmatprep.subr.mxu0 0.0
    %341 = vmatpush2.msra.mxu0 0.0
    %342 = vmatprep.subr.mxu0 0.0
    %343 = vmatpush2.msra.mxu0 0.0
    %344 = vmatprep.subr.mxu0 0.0
    %345 = vmatpush2.msra.mxu0 0.0
    %346 = vmatprep.subr.mxu0 0.0
    %347 = vmatpush2.msra.mxu0 0.0
    %348 = vmatprep.subr.mxu0 0.0
    %349 = vmatpush2.msra.mxu0 0.0
    %350 = vmatprep.subr.mxu0 0.0
    %351 = vmatpush2.msra.mxu0 0.0
    %352 = vmatprep.subr.mxu0 0.0
    %353 = vmatpush2.msra.mxu0 0.0
    %354 = vmatprep.subr.mxu0 0.0
    %355 = vmatpush2.msra.mxu0 0.0
    %356 = vmatprep.mubr.f32.mxu0 0.0
    %v357 = vand.u32 %v93, 4294901760
    %358 = vmatmul.mubr.f32.gmra.mxu0 %v357
    %v359 = vpop.f32.mrf.mxu0
    %v360 = vadd.f32 %v199, %v359
    %v361 = vpop.f32.mrf.mxu0
    %362 = vmatprep.mubr.f32.mxu0 0.0
    %v363 = vand.u32 %v94, 4294901760
    %364 = vmatmul.mubr.f32.gmra.mxu0 %v363
    %v365 = vpop.f32.mrf.mxu0
    %v366 = vadd.f32 %v209, %v365
    %v367 = vpop.f32.mrf.mxu0
    %368 = vdwg.mxu0
    %369 = vmatprep.subr.mxu0 0.0
    %v370 = vand.u32 %v110, 4294901760
    %v371 = vsub.f32 %v110, %v370
    %372 = vmatpush1.msra.mxu0 %v371
    %373 = vmatprep.subr.mxu0 0.0
    %v374 = vand.u32 %v109, 4294901760
    %v375 = vsub.f32 %v109, %v374
    %376 = vmatpush1.msra.mxu0 %v375
    %377 = vmatprep.subr.mxu0 0.0
    %v378 = vand.u32 %v108, 4294901760
    %v379 = vsub.f32 %v108, %v378
    %380 = vmatpush1.msra.mxu0 %v379
    %381 = vmatprep.subr.mxu0 0.0
    %v382 = vand.u32 %v107, 4294901760
    %v383 = vsub.f32 %v107, %v382
    %384 = vmatpush1.msra.mxu0 %v383
    %385 = vmatprep.subr.mxu0 0.0
    %v386 = vand.u32 %v106, 4294901760
    %v387 = vsub.f32 %v106, %v386
    %388 = vmatpush1.msra.mxu0 %v387
    %389 = vmatprep.subr.mxu0 0.0
    %v390 = vand.u32 %v105, 4294901760
    %v391 = vsub.f32 %v105, %v390
    %392 = vmatpush1.msra.mxu0 %v391
    %393 = vmatprep.subr.mxu0 0.0
    %v394 = vand.u32 %v104, 4294901760
    %v395 = vsub.f32 %v104, %v394
    %396 = vmatpush1.msra.mxu0 %v395
    %397 = vmatprep.subr.mxu0 0.0
    %v398 = vand.u32 %v103, 4294901760
    %v399 = vsub.f32 %v103, %v398
    %400 = vmatpush1.msra.mxu0 %v399
    %401 = vmatprep.subr.mxu0 0.0
    %v402 = vand.u32 %v102, 4294901760
    %v403 = vsub.f32 %v102, %v402
    %404 = vmatpush1.msra.mxu0 %v403
    %405 = vmatprep.subr.mxu0 0.0
    %v406 = vand.u32 %v101, 4294901760
    %v407 = vsub.f32 %v101, %v406
    %408 = vmatpush1.msra.mxu0 %v407
    %409 = vmatprep.subr.mxu0 0.0
    %v410 = vand.u32 %v100, 4294901760
    %v411 = vsub.f32 %v100, %v410
    %412 = vmatpush1.msra.mxu0 %v411
    %413 = vmatprep.subr.mxu0 0.0
    %v414 = vand.u32 %v99, 4294901760
    %v415 = vsub.f32 %v99, %v414
    %416 = vmatpush1.msra.mxu0 %v415
    %417 = vmatprep.subr.mxu0 0.0
    %v418 = vand.u32 %v98, 4294901760
    %v419 = vsub.f32 %v98, %v418
    %420 = vmatpush1.msra.mxu0 %v419
    %421 = vmatprep.subr.mxu0 0.0
    %v422 = vand.u32 %v97, 4294901760
    %v423 = vsub.f32 %v97, %v422
    %424 = vmatpush1.msra.mxu0 %v423
    %425 = vmatprep.subr.mxu0 0.0
    %v426 = vand.u32 %v96, 4294901760
    %v427 = vsub.f32 %v96, %v426
    %428 = vmatpush1.msra.mxu0 %v427
    %429 = vmatprep.subr.mxu0 0.0
    %v430 = vand.u32 %v95, 4294901760
    %v431 = vsub.f32 %v95, %v430
    %432 = vmatpush1.msra.mxu0 %v431
    %433 = vmatprep.subr.mxu0 0.0
    %434 = vmatpush2.msra.mxu0 0.0
    %435 = vmatprep.subr.mxu0 0.0
    %436 = vmatpush2.msra.mxu0 0.0
    %437 = vmatprep.subr.mxu0 0.0
    %438 = vmatpush2.msra.mxu0 0.0
    %439 = vmatprep.subr.mxu0 0.0
    %440 = vmatpush2.msra.mxu0 0.0
    %441 = vmatprep.subr.mxu0 0.0
    %442 = vmatpush2.msra.mxu0 0.0
    %443 = vmatprep.subr.mxu0 0.0
    %444 = vmatpush2.msra.mxu0 0.0
    %445 = vmatprep.subr.mxu0 0.0
    %446 = vmatpush2.msra.mxu0 0.0
    %447 = vmatprep.subr.mxu0 0.0
    %448 = vmatpush2.msra.mxu0 0.0
    %449 = vmatprep.subr.mxu0 0.0
    %450 = vmatpush2.msra.mxu0 0.0
    %451 = vmatprep.subr.mxu0 0.0
    %452 = vmatpush2.msra.mxu0 0.0
    %453 = vmatprep.subr.mxu0 0.0
    %454 = vmatpush2.msra.mxu0 0.0
    %455 = vmatprep.subr.mxu0 0.0
    %456 = vmatpush2.msra.mxu0 0.0
    %457 = vmatprep.subr.mxu0 0.0
    %458 = vmatpush2.msra.mxu0 0.0
    %459 = vmatprep.subr.mxu0 0.0
    %460 = vmatpush2.msra.mxu0 0.0
    %461 = vmatprep.subr.mxu0 0.0
    %462 = vmatpush2.msra.mxu0 0.0
    %463 = vmatprep.subr.mxu0 0.0
    %464 = vmatpush2.msra.mxu0 0.0
    %465 = vmatprep.mubr.f32.mxu0 0.0
    %v466 = vand.u32 %v93, 4294901760
    %v467 = vsub.f32 %v93, %v466
    %468 = vmatmul.mubr.f32.gmra.mxu0 %v467
    %v469 = vpop.f32.mrf.mxu0
    %v470 = vadd.f32 %v360, %v469
    %v471 = vpop.f32.mrf.mxu0
    %472 = vmatprep.mubr.f32.mxu0 0.0
    %v473 = vand.u32 %v94, 4294901760
    %v474 = vsub.f32 %v94, %v473
    %475 = vmatmul.mubr.f32.gmra.mxu0 %v474
    %v476 = vpop.f32.mrf.mxu0
    %v477 = vadd.f32 %v366, %v476
    %v478 = vpop.f32.mrf.mxu0
    %479 = vdwg.mxu0
    %480 = vmatprep.subr.mxu0 0.0
    %v481 = vand.u32 %v110, 4294901760
    %482 = vmatpush1.msra.mxu0 %v481
    %483 = vmatprep.subr.mxu0 0.0
    %v484 = vand.u32 %v109, 4294901760
    %485 = vmatpush1.msra.mxu0 %v484
    %486 = vmatprep.subr.mxu0 0.0
    %v487 = vand.u32 %v108, 4294901760
    %488 = vmatpush1.msra.mxu0 %v487
    %489 = vmatprep.subr.mxu0 0.0
    %v490 = vand.u32 %v107, 4294901760
    %491 = vmatpush1.msra.mxu0 %v490
    %492 = vmatprep.subr.mxu0 0.0
    %v493 = vand.u32 %v106, 4294901760
    %494 = vmatpush1.msra.mxu0 %v493
    %495 = vmatprep.subr.mxu0 0.0
    %v496 = vand.u32 %v105, 4294901760
    %497 = vmatpush1.msra.mxu0 %v496
    %498 = vmatprep.subr.mxu0 0.0
    %v499 = vand.u32 %v104, 4294901760
    %500 = vmatpush1.msra.mxu0 %v499
    %501 = vmatprep.subr.mxu0 0.0
    %v502 = vand.u32 %v103, 4294901760
    %503 = vmatpush1.msra.mxu0 %v502
    %504 = vmatprep.subr.mxu0 0.0
    %v505 = vand.u32 %v102, 4294901760
    %506 = vmatpush1.msra.mxu0 %v505
    %507 = vmatprep.subr.mxu0 0.0
    %v508 = vand.u32 %v101, 4294901760
    %509 = vmatpush1.msra.mxu0 %v508
    %510 = vmatprep.subr.mxu0 0.0
    %v511 = vand.u32 %v100, 4294901760
    %512 = vmatpush1.msra.mxu0 %v511
    %513 = vmatprep.subr.mxu0 0.0
    %v514 = vand.u32 %v99, 4294901760
    %515 = vmatpush1.msra.mxu0 %v514
    %516 = vmatprep.subr.mxu0 0.0
    %v517 = vand.u32 %v98, 4294901760
    %518 = vmatpush1.msra.mxu0 %v517
    %519 = vmatprep.subr.mxu0 0.0
    %v520 = vand.u32 %v97, 4294901760
    %521 = vmatpush1.msra.mxu0 %v520
    %522 = vmatprep.subr.mxu0 0.0
    %v523 = vand.u32 %v96, 4294901760
    %524 = vmatpush1.msra.mxu0 %v523
    %525 = vmatprep.subr.mxu0 0.0
    %v526 = vand.u32 %v95, 4294901760
    %527 = vmatpush1.msra.mxu0 %v526
    %528 = vmatprep.subr.mxu0 0.0
    %529 = vmatpush2.msra.mxu0 0.0
    %530 = vmatprep.subr.mxu0 0.0
    %531 = vmatpush2.msra.mxu0 0.0
    %532 = vmatprep.subr.mxu0 0.0
    %533 = vmatpush2.msra.mxu0 0.0
    %534 = vmatprep.subr.mxu0 0.0
    %535 = vmatpush2.msra.mxu0 0.0
    %536 = vmatprep.subr.mxu0 0.0
    %537 = vmatpush2.msra.mxu0 0.0
    %538 = vmatprep.subr.mxu0 0.0
    %539 = vmatpush2.msra.mxu0 0.0
    %540 = vmatprep.subr.mxu0 0.0
    %541 = vmatpush2.msra.mxu0 0.0
    %542 = vmatprep.subr.mxu0 0.0
    %543 = vmatpush2.msra.mxu0 0.0
    %544 = vmatprep.subr.mxu0 0.0
    %545 = vmatpush2.msra.mxu0 0.0
    %546 = vmatprep.subr.mxu0 0.0
    %547 = vmatpush2.msra.mxu0 0.0
    %548 = vmatprep.subr.mxu0 0.0
    %549 = vmatpush2.msra.mxu0 0.0
    %550 = vmatprep.subr.mxu0 0.0
    %551 = vmatpush2.msra.mxu0 0.0
    %552 = vmatprep.subr.mxu0 0.0
    %553 = vmatpush2.msra.mxu0 0.0
    %554 = vmatprep.subr.mxu0 0.0
    %555 = vmatpush2.msra.mxu0 0.0
    %556 = vmatprep.subr.mxu0 0.0
    %557 = vmatpush2.msra.mxu0 0.0
    %558 = vmatprep.subr.mxu0 0.0
    %559 = vmatpush2.msra.mxu0 0.0
    %560 = vmatprep.mubr.f32.mxu0 0.0
    %v561 = vand.u32 %v93, 4294901760
    %v562 = vsub.f32 %v93, %v561
    %v563 = vand.u32 %v562, 4294901760
    %564 = vmatmul.mubr.f32.gmra.mxu0 %v563
    %v565 = vpop.f32.mrf.mxu0
    %v566 = vadd.f32 %v470, %v565
    %v567 = vpop.f32.mrf.mxu0
    %568 = vmatprep.mubr.f32.mxu0 0.0
    %v569 = vand.u32 %v94, 4294901760
    %v570 = vsub.f32 %v94, %v569
    %v571 = vand.u32 %v570, 4294901760
    %572 = vmatmul.mubr.f32.gmra.mxu0 %v571
    %v573 = vpop.f32.mrf.mxu0
    %v574 = vadd.f32 %v477, %v573
    %v575 = vpop.f32.mrf.mxu0
    %576 = vdwg.mxu0
    %577 = vmatprep.subr.mxu0 0.0
    %v578 = vand.u32 %v110, 4294901760
    %v579 = vsub.f32 %v110, %v578
    %v580 = vand.u32 %v579, 4294901760
    %581 = vmatpush1.msra.mxu0 %v580
    %582 = vmatprep.subr.mxu0 0.0
    %v583 = vand.u32 %v109, 4294901760
    %v584 = vsub.f32 %v109, %v583
    %v585 = vand.u32 %v584, 4294901760
    %586 = vmatpush1.msra.mxu0 %v585
    %587 = vmatprep.subr.mxu0 0.0
    %v588 = vand.u32 %v108, 4294901760
    %v589 = vsub.f32 %v108, %v588
    %v590 = vand.u32 %v589, 4294901760
    %591 = vmatpush1.msra.mxu0 %v590
    %592 = vmatprep.subr.mxu0 0.0
    %v593 = vand.u32 %v107, 4294901760
    %v594 = vsub.f32 %v107, %v593
    %v595 = vand.u32 %v594, 4294901760
    %596 = vmatpush1.msra.mxu0 %v595
    %597 = vmatprep.subr.mxu0 0.0
    %v598 = vand.u32 %v106, 4294901760
    %v599 = vsub.f32 %v106, %v598
    %v600 = vand.u32 %v599, 4294901760
    %601 = vmatpush1.msra.mxu0 %v600
    %602 = vmatprep.subr.mxu0 0.0
    %v603 = vand.u32 %v105, 4294901760
    %v604 = vsub.f32 %v105, %v603
    %v605 = vand.u32 %v604, 4294901760
    %606 = vmatpush1.msra.mxu0 %v605
    %607 = vmatprep.subr.mxu0 0.0
    %v608 = vand.u32 %v104, 4294901760
    %v609 = vsub.f32 %v104, %v608
    %v610 = vand.u32 %v609, 4294901760
    %611 = vmatpush1.msra.mxu0 %v610
    %612 = vmatprep.subr.mxu0 0.0
    %v613 = vand.u32 %v103, 4294901760
    %v614 = vsub.f32 %v103, %v613
    %v615 = vand.u32 %v614, 4294901760
    %616 = vmatpush1.msra.mxu0 %v615
    %617 = vmatprep.subr.mxu0 0.0
    %v618 = vand.u32 %v102, 4294901760
    %v619 = vsub.f32 %v102, %v618
    %v620 = vand.u32 %v619, 4294901760
    %621 = vmatpush1.msra.mxu0 %v620
    %622 = vmatprep.subr.mxu0 0.0
    %v623 = vand.u32 %v101, 4294901760
    %v624 = vsub.f32 %v101, %v623
    %v625 = vand.u32 %v624, 4294901760
    %626 = vmatpush1.msra.mxu0 %v625
    %627 = vmatprep.subr.mxu0 0.0
    %v628 = vand.u32 %v100, 4294901760
    %v629 = vsub.f32 %v100, %v628
    %v630 = vand.u32 %v629, 4294901760
    %631 = vmatpush1.msra.mxu0 %v630
    %632 = vmatprep.subr.mxu0 0.0
    %v633 = vand.u32 %v99, 4294901760
    %v634 = vsub.f32 %v99, %v633
    %v635 = vand.u32 %v634, 4294901760
    %636 = vmatpush1.msra.mxu0 %v635
    %637 = vmatprep.subr.mxu0 0.0
    %v638 = vand.u32 %v98, 4294901760
    %v639 = vsub.f32 %v98, %v638
    %v640 = vand.u32 %v639, 4294901760
    %641 = vmatpush1.msra.mxu0 %v640
    %642 = vmatprep.subr.mxu0 0.0
    %v643 = vand.u32 %v97, 4294901760
    %v644 = vsub.f32 %v97, %v643
    %v645 = vand.u32 %v644, 4294901760
    %646 = vmatpush1.msra.mxu0 %v645
    %647 = vmatprep.subr.mxu0 0.0
    %v648 = vand.u32 %v96, 4294901760
    %v649 = vsub.f32 %v96, %v648
    %v650 = vand.u32 %v649, 4294901760
    %651 = vmatpush1.msra.mxu0 %v650
    %652 = vmatprep.subr.mxu0 0.0
    %v653 = vand.u32 %v95, 4294901760
    %v654 = vsub.f32 %v95, %v653
    %v655 = vand.u32 %v654, 4294901760
    %656 = vmatpush1.msra.mxu0 %v655
    %657 = vmatprep.subr.mxu0 0.0
    %658 = vmatpush2.msra.mxu0 0.0
    %659 = vmatprep.subr.mxu0 0.0
    %660 = vmatpush2.msra.mxu0 0.0
    %661 = vmatprep.subr.mxu0 0.0
    %662 = vmatpush2.msra.mxu0 0.0
    %663 = vmatprep.subr.mxu0 0.0
    %664 = vmatpush2.msra.mxu0 0.0
    %665 = vmatprep.subr.mxu0 0.0
    %666 = vmatpush2.msra.mxu0 0.0
    %667 = vmatprep.subr.mxu0 0.0
    %668 = vmatpush2.msra.mxu0 0.0
    %669 = vmatprep.subr.mxu0 0.0
    %670 = vmatpush2.msra.mxu0 0.0
    %671 = vmatprep.subr.mxu0 0.0
    %672 = vmatpush2.msra.mxu0 0.0
    %673 = vmatprep.subr.mxu0 0.0
    %674 = vmatpush2.msra.mxu0 0.0
    %675 = vmatprep.subr.mxu0 0.0
    %676 = vmatpush2.msra.mxu0 0.0
    %677 = vmatprep.subr.mxu0 0.0
    %678 = vmatpush2.msra.mxu0 0.0
    %679 = vmatprep.subr.mxu0 0.0
    %680 = vmatpush2.msra.mxu0 0.0
    %681 = vmatprep.subr.mxu0 0.0
    %682 = vmatpush2.msra.mxu0 0.0
    %683 = vmatprep.subr.mxu0 0.0
    %684 = vmatpush2.msra.mxu0 0.0
    %685 = vmatprep.subr.mxu0 0.0
    %686 = vmatpush2.msra.mxu0 0.0
    %687 = vmatprep.subr.mxu0 0.0
    %688 = vmatpush2.msra.mxu0 0.0
    %689 = vmatprep.mubr.f32.mxu0 0.0
    %v690 = vand.u32 %v93, 4294901760
    %691 = vmatmul.mubr.f32.gmra.mxu0 %v690
    %v692 = vpop.f32.mrf.mxu0
    %v693 = vadd.f32 %v566, %v692
    %v694 = vpop.f32.mrf.mxu0
    %695 = vmatprep.mubr.f32.mxu0 0.0
    %v696 = vand.u32 %v94, 4294901760
    %697 = vmatmul.mubr.f32.gmra.mxu0 %v696
    %v698 = vpop.f32.mrf.mxu0
    %v699 = vadd.f32 %v574, %v698
    %v700 = vpop.f32.mrf.mxu0
    %701 = vdwg.mxu0
    %702 = vmatprep.subr.mxu0 0.0
    %v703 = vand.u32 %v110, 4294901760
    %704 = vmatpush1.msra.mxu0 %v703
    %705 = vmatprep.subr.mxu0 0.0
    %v706 = vand.u32 %v109, 4294901760
    %707 = vmatpush1.msra.mxu0 %v706
    %708 = vmatprep.subr.mxu0 0.0
    %v709 = vand.u32 %v108, 4294901760
    %710 = vmatpush1.msra.mxu0 %v709
    %711 = vmatprep.subr.mxu0 0.0
    %v712 = vand.u32 %v107, 4294901760
    %713 = vmatpush1.msra.mxu0 %v712
    %714 = vmatprep.subr.mxu0 0.0
    %v715 = vand.u32 %v106, 4294901760
    %716 = vmatpush1.msra.mxu0 %v715
    %717 = vmatprep.subr.mxu0 0.0
    %v718 = vand.u32 %v105, 4294901760
    %719 = vmatpush1.msra.mxu0 %v718
    %720 = vmatprep.subr.mxu0 0.0
    %v721 = vand.u32 %v104, 4294901760
    %722 = vmatpush1.msra.mxu0 %v721
    %723 = vmatprep.subr.mxu0 0.0
    %v724 = vand.u32 %v103, 4294901760
    %725 = vmatpush1.msra.mxu0 %v724
    %726 = vmatprep.subr.mxu0 0.0
    %v727 = vand.u32 %v102, 4294901760
    %728 = vmatpush1.msra.mxu0 %v727
    %729 = vmatprep.subr.mxu0 0.0
    %v730 = vand.u32 %v101, 4294901760
    %731 = vmatpush1.msra.mxu0 %v730
    %732 = vmatprep.subr.mxu0 0.0
    %v733 = vand.u32 %v100, 4294901760
    %734 = vmatpush1.msra.mxu0 %v733
    %735 = vmatprep.subr.mxu0 0.0
    %v736 = vand.u32 %v99, 4294901760
    %737 = vmatpush1.msra.mxu0 %v736
    %738 = vmatprep.subr.mxu0 0.0
    %v739 = vand.u32 %v98, 4294901760
    %740 = vmatpush1.msra.mxu0 %v739
    %741 = vmatprep.subr.mxu0 0.0
    %v742 = vand.u32 %v97, 4294901760
    %743 = vmatpush1.msra.mxu0 %v742
    %744 = vmatprep.subr.mxu0 0.0
    %v745 = vand.u32 %v96, 4294901760
    %746 = vmatpush1.msra.mxu0 %v745
    %747 = vmatprep.subr.mxu0 0.0
    %v748 = vand.u32 %v95, 4294901760
    %749 = vmatpush1.msra.mxu0 %v748
    %750 = vmatprep.subr.mxu0 0.0
    %751 = vmatpush2.msra.mxu0 0.0
    %752 = vmatprep.subr.mxu0 0.0
    %753 = vmatpush2.msra.mxu0 0.0
    %754 = vmatprep.subr.mxu0 0.0
    %755 = vmatpush2.msra.mxu0 0.0
    %756 = vmatprep.subr.mxu0 0.0
    %757 = vmatpush2.msra.mxu0 0.0
    %758 = vmatprep.subr.mxu0 0.0
    %759 = vmatpush2.msra.mxu0 0.0
    %760 = vmatprep.subr.mxu0 0.0
    %761 = vmatpush2.msra.mxu0 0.0
    %762 = vmatprep.subr.mxu0 0.0
    %763 = vmatpush2.msra.mxu0 0.0
    %764 = vmatprep.subr.mxu0 0.0
    %765 = vmatpush2.msra.mxu0 0.0
    %766 = vmatprep.subr.mxu0 0.0
    %767 = vmatpush2.msra.mxu0 0.0
    %768 = vmatprep.subr.mxu0 0.0
    %769 = vmatpush2.msra.mxu0 0.0
    %770 = vmatprep.subr.mxu0 0.0
    %771 = vmatpush2.msra.mxu0 0.0
    %772 = vmatprep.subr.mxu0 0.0
    %773 = vmatpush2.msra.mxu0 0.0
    %774 = vmatprep.subr.mxu0 0.0
    %775 = vmatpush2.msra.mxu0 0.0
    %776 = vmatprep.subr.mxu0 0.0
    %777 = vmatpush2.msra.mxu0 0.0
    %778 = vmatprep.subr.mxu0 0.0
    %779 = vmatpush2.msra.mxu0 0.0
    %780 = vmatprep.subr.mxu0 0.0
    %781 = vmatpush2.msra.mxu0 0.0
    %782 = vmatprep.mubr.f32.mxu0 0.0
    %v783 = vand.u32 %v93, 4294901760
    %784 = vmatmul.mubr.f32.gmra.mxu0 %v783
    %v785 = vpop.f32.mrf.mxu0
    %v786 = vadd.f32 %v693, %v785
    %v787 = vpop.f32.mrf.mxu0
    %788 = vmatprep.mubr.f32.mxu0 0.0
    %v789 = vand.u32 %v94, 4294901760
    %790 = vmatmul.mubr.f32.gmra.mxu0 %v789
    %v791 = vpop.f32.mrf.mxu0
    %v792 = vadd.f32 %v699, %v791
    %v793 = vpop.f32.mrf.mxu0
    %794 = vdwg.mxu0
    %v795 = vrsqrt.pop %v786
    %v796 = vmul.f32 %v786, %v795
    %vm797 = vcmp.eq.f32.partialorder %v786, inf
    %v798 = vsel %vm797, %v786, %v796
    %vm799 = vcmp.eq.f32.partialorder %v786, 0.0
    %v800 = vand.u32 %v786, 2147483648
    %v801 = vsel %vm799, %v800, %v798
    %v802 = vrsqrt.pop %v792
    %v803 = vmul.f32 %v792, %v802
    %vm804 = vcmp.eq.f32.partialorder %v792, inf
    %v805 = vsel %vm804, %v792, %v803
    %vm806 = vcmp.eq.f32.partialorder %v792, 0.0
    %v807 = vand.u32 %v792, 2147483648
    %v808 = vsel %vm806, %v807, %v805
    %p809 = scmp.lt.s32.totalorder %s79, 0
    // Predicated region
    $region18: #{tpu_custom_call.1} parent=1 // pred_check
      %p810 = pneg %p809
    $region19: #{tpu_custom_call.1} parent=1 // pred_check_branch
      %812 = sbr.rel (%p810) target = $region21
    $region20: #{tpu_custom_call.1} parent=1 // pred_region
      %v813 = vld [vmem:[#allocation2] sm:$0xff]
      %vm814 = vcmask 64512
      %v815 = vsel %vm814, %v801, 0.0
      %v816 = vsel %vm814, %v808, 0.0
      %v817 = vadd.f32 %v815, %v816
      %v818 = vrot.slane %v817, 4
      %v819 = vadd.f32 %v817, %v818
      %v820 = vrot.slane %v819, 2
      %v821 = vadd.f32 %v819, %v820
      %v822 = vrot.slane %v821, 1
      %v823 = vadd.f32 %v821, %v822
      %v824 = vsel %vm814, %v823, 0.0
      %825 = vadd.xlane.f32.xlu0 %v824
      %v826 = vpop.xlane.xlu0 %825
      %v827 = vadd.f32 %v813, %v826
      %828 = vst [vmem:[#allocation2] sm:$0xff] %v827
    $region21: #{tpu_custom_call.1} parent=1 // pred_fallthru
      _
    %p829 = scmp.eq.s32.totalorder %s79, 0
    // Predicated region
    $region22: #{tpu_custom_call.1} parent=1 // pred_check
      %p830 = pneg %p829
    $region23: #{tpu_custom_call.1} parent=1 // pred_check_branch
      %832 = sbr.rel (%p830) target = $region25
    $region24: #{tpu_custom_call.1} parent=1 // pred_region
      %s833 = smul.u32 %s79, 16
      %v834 = vlaneseq
      %v835 = vshrl.u32 %v834, 7
      %v836 = vadd.s32 %v835, 8
      %v837 = vstv %s833
      %v838 = vadd.s32 %v837, %v835
      %v839 = vadd.s32 %v837, %v836
      %v840 = vlaneseq
      %v841 = vand.u32 %v840, 127
      %v842 = vmul.u32 %v838, 8
      %v843 = vmul.u32 %v839, 8
      %v844 = vadd.s32 %v842, %v841
      %v845 = vadd.s32 %v843, %v841
      %vm846 = vcmp.lt.s32.totalorder %v844, 128
      %vm847 = vcmp.lt.s32.totalorder %v845, 128
      %v848 = vld [vmem:[#allocation2] sm:$0xff]
      %v849 = vsel %vm846, %v801, 0.0
      %v850 = vsel %vm847, %v808, 0.0
      %vm851 = vcmask 64512
      %v852 = vsel %vm851, %v849, 0.0
      %v853 = vsel %vm851, %v850, 0.0
      %v854 = vadd.f32 %v852, %v853
      %v855 = vrot.slane %v854, 4
      %v856 = vadd.f32 %v854, %v855
      %v857 = vrot.slane %v856, 2
      %v858 = vadd.f32 %v856, %v857
      %v859 = vrot.slane %v858, 1
      %v860 = vadd.f32 %v858, %v859
      %v861 = vsel %vm851, %v860, 0.0
      %862 = vadd.xlane.f32.xlu0 %v861
      %v863 = vpop.xlane.xlu0 %862
      %v864 = vadd.f32 %v848, %v863
      %865 = vst [vmem:[#allocation2] sm:$0xff] %v864
    $region25: #{tpu_custom_call.1} parent=1 // pred_fallthru
      _
    // Predicated region
    $region26: #{tpu_custom_call.1} parent=1 // pred_check
      _
    $region27: #{tpu_custom_call.1} parent=1 // pred_check_branch
      %867 = sbr.rel (0) target = $region29
    $region28: #{tpu_custom_call.1} parent=1 // pred_region
      %s869 = ssub.s32 128, 128
      %870 = vsyncadd [#allocation3], %s869
      %s872 = sshll.u32 [#allocation2], 4
      %s873 = int_to_ptr.vmem [resolvable:$true] %s872
      %875 = dma.vmem_to_hbm [thread:$0]  %s873, 128, %s3, [#allocation3]
    $region29: #{tpu_custom_call.1} parent=1 // pred_fallthru
      _
    // Predicated region
    $region30: #{tpu_custom_call.1} parent=1 // pred_check
      _
    $region31: #{tpu_custom_call.1} parent=1 // pred_check_branch
      %877 = sbr.rel (0) target = $region33
    $region32: #{tpu_custom_call.1} parent=1 // pred_region
      %878 = dma.done [#allocation3], 128
    $region33: #{tpu_custom_call.1} parent=1 // pred_fallthru
      _
    %879 = vsyncpa [#allocation3], 1

</llo_original>
